<compile_context>
chip_gen: v6e
topology: v6e:2x2x1
jax: 0.10.0
libtpu: 0.0.40
codegen_flags: <defaults>
</compile_context>

<pallas_src>
import functools

import jax
import jax.numpy as jnp
from jax.experimental import pallas as pl
from jax.experimental.pallas import tpu as pltpu


def actor_critic_kernel(x_ref, w1_ref, b1_ref, w2_ref, b2_ref, out_ref, *, out_dim):
    x = x_ref[...]

    # Fused first layer (critic hidden | actor hidden): one MXU matmul.
    h = jnp.dot(x, w1_ref[...], preferred_element_type=jnp.float32) + b1_ref[...]
    h = jnp.maximum(h, 0.0)

    # Fused block-diagonal second layer -> lane-dense (B, 128) slab:
    #   lane 0          : critic value
    #   lanes 1..out    : actor logits (pre-tanh)
    #   lanes out+1..127: padding (zeros)
    y = jnp.dot(h, w2_ref[...], preferred_element_type=jnp.float32) + b2_ref[...]

    # Apply tanh only to the mu lanes; value lane and padding pass through.
    lane = jax.lax.broadcasted_iota(jnp.int32, y.shape, 1)
    mu_mask = (lane >= 1) & (lane < 1 + out_dim)
    out_ref[...] = jnp.where(mu_mask, jnp.tanh(y), y).astype(out_ref.dtype)


def fuse_params(p, pad=128):
    """One-time weight fusion/padding (NOT in the per-step path)."""
    hidden = p["w1c"].shape[1]
    out_dim = p["w2a"].shape[1]
    assert 1 + out_dim <= pad

    w1 = jnp.concatenate([p["w1c"], p["w1a"]], axis=1)        # (in, 2H)
    b1 = jnp.concatenate([p["b1c"], p["b1a"]], axis=1)        # (1, 2H)

    w2 = jnp.zeros((2 * hidden, pad), jnp.float32)            # block-diagonal
    w2 = w2.at[:hidden, 0:1].set(p["w2c"])                    # critic -> lane 0
    w2 = w2.at[hidden:, 1:1 + out_dim].set(p["w2a"])          # actor  -> lanes 1..out

    b2 = jnp.zeros((1, pad), jnp.float32)
    b2 = b2.at[:, 0:1].set(p["b2c"])
    b2 = b2.at[:, 1:1 + out_dim].set(p["b2a"])

    return dict(w1=w1, b1=b1, w2=w2, b2=b2, out_dim=out_dim, pad=pad)


def actor_critic_forward(x, fused, log_std):
    """Single fused Pallas kernel; std = exp(log_std) computed outside."""
    B, in_dim = x.shape
    out_dim = fused["out_dim"]
    pad = fused["pad"]
    h2 = fused["w1"].shape[1]

    vmem = pl.BlockSpec(memory_space=pltpu.VMEM)

    flops = 2 * B * in_dim * h2 + 2 * B * h2 * pad
    bytes_accessed = 4 * (
        x.size + fused["w1"].size + fused["b1"].size
        + fused["w2"].size + fused["b2"].size + B * pad
    )

    packed = pl.pallas_call(
        functools.partial(actor_critic_kernel, out_dim=out_dim),
        out_shape=jax.ShapeDtypeStruct((B, pad), jnp.float32),
        in_specs=[vmem] * 5,
        out_specs=vmem,
        cost_estimate=pl.CostEstimate(
            flops=flops,
            transcendentals=B * out_dim,
            bytes_accessed=bytes_accessed,
        ),
    )(x, fused["w1"], fused["b1"], fused["w2"], fused["b2"])

    value = packed[:, 0:1]
    mu = packed[:, 1:1 + out_dim]
    std = jnp.broadcast_to(jnp.exp(log_std), mu.shape)  # param-only; hoisted out
    return mu, std, value


def init_params(key, input_dim, output_dim, hidden_dim, std=0.0):
    """Deterministic init mimicking torch.nn.Linear (uniform +/- 1/sqrt(fan_in))."""
    keys = jax.random.split(key, 8)

    def linear(kw, kb, fan_in, fan_out):
        bound = 1.0 / jnp.sqrt(fan_in)
        w = jax.random.uniform(kw, (fan_in, fan_out), jnp.float32, -bound, bound)
        b = jax.random.uniform(kb, (1, fan_out), jnp.float32, -bound, bound)
        return w, b

    w1c, b1c = linear(keys[0], keys[1], input_dim, hidden_dim)
    w2c, b2c = linear(keys[2], keys[3], hidden_dim, 1)
    w1a, b1a = linear(keys[4], keys[5], input_dim, hidden_dim)
    w2a, b2a = linear(keys[6], keys[7], hidden_dim, output_dim)
    log_std = jnp.ones((1, output_dim), jnp.float32) * std

    return dict(
        w1c=w1c, b1c=b1c, w2c=w2c, b2c=b2c,
        w1a=w1a, b1a=b1a, w2a=w2a, b2a=b2a,
        log_std=log_std,
    )


def reference_forward(x, p):
    """Plain-JAX reference matching the PyTorch module semantics."""
    hc = jnp.maximum(x @ p["w1c"] + p["b1c"], 0.0)
    value = hc @ p["w2c"] + p["b2c"]
    ha = jnp.maximum(x @ p["w1a"] + p["b1a"], 0.0)
    mu = jnp.tanh(ha @ p["w2a"] + p["b2a"])
    std = jnp.broadcast_to(jnp.exp(p["log_std"]), mu.shape)
    return mu, std, value


if __name__ == "__main__":
    # Small shapes implied by forward(): x is (batch, input_dim)
    batch, input_dim, hidden_dim, output_dim = 8, 32, 32, 4

    key = jax.random.PRNGKey(0)
    key_x, key_p = jax.random.split(key)

    x = jax.random.normal(key_x, (batch, input_dim), jnp.float32)
    params = init_params(key_p, input_dim, output_dim, hidden_dim, std=0.0)

    # Fuse/pad weights ONCE (e.g. per parameter update), not per forward call.
    fused = fuse_params(params)

    mu, std, value = jax.block_until_ready(
        actor_critic_forward(x, fused, params["log_std"])
    )

    mu_ref, std_ref, value_ref = reference_forward(x, params)
    assert mu.shape == (batch, output_dim)
    assert std.shape == (batch, output_dim)
    assert value.shape == (batch, 1)
    assert jnp.allclose(mu, mu_ref, atol=1e-5)
    assert jnp.allclose(std, std_ref, atol=1e-5)
    assert jnp.allclose(value, value_ref, atol=1e-5)

    print("KERNEL_OK")
</pallas_src>

<mosaic_0001>
module attributes {stable_mosaic.version = 11 : i64} {
  func.func @actor_critic_kernel(%arg0: memref<8x32xf32, #tpu.memory_space<vmem>>, %arg1: memref<32x64xf32, #tpu.memory_space<vmem>>, %arg2: memref<1x64xf32, #tpu.memory_space<vmem>>, %arg3: memref<64x128xf32, #tpu.memory_space<vmem>>, %arg4: memref<1x128xf32, #tpu.memory_space<vmem>>, %arg5: memref<8x128xf32, #tpu.memory_space<vmem>>) attributes {dimension_semantics = [], scalar_prefetch = 0 : i64, scratch_operands = 0 : i64, tpu.core_type = #tpu.core_type<tc>} {
    %c0 = arith.constant 0 : index
    %c0_0 = arith.constant 0 : index
    %0 = vector.load %arg0[%c0, %c0_0] : memref<8x32xf32, #tpu.memory_space<vmem>>, vector<8x32xf32>
    %c0_1 = arith.constant 0 : index
    %c0_2 = arith.constant 0 : index
    %1 = vector.load %arg1[%c0_1, %c0_2] : memref<32x64xf32, #tpu.memory_space<vmem>>, vector<32x64xf32>
    %cst = arith.constant dense<0.000000e+00> : vector<8x64xf32>
    %2 = tpu.matmul %0, %1, %cst {dimension_numbers = #tpu.dot_dimension_numbers<[1], [0], [0], [1], [0, 0, 1, 1], [], []>} : vector<8x32xf32>, vector<32x64xf32>, vector<8x64xf32> -> vector<8x64xf32>
    %c0_3 = arith.constant 0 : index
    %c0_4 = arith.constant 0 : index
    %3 = vector.load %arg2[%c0_3, %c0_4] : memref<1x64xf32, #tpu.memory_space<vmem>>, vector<1x64xf32>
    %4 = vector.broadcast %3 : vector<1x64xf32> to vector<8x64xf32>
    %5 = arith.addf %2, %4 : vector<8x64xf32>
    %cst_5 = arith.constant 0.000000e+00 : f32
    %6 = vector.broadcast %cst_5 : f32 to vector<8x64xf32>
    %7 = arith.maximumf %5, %6 : vector<8x64xf32>
    %c0_6 = arith.constant 0 : index
    %c0_7 = arith.constant 0 : index
    %8 = vector.load %arg3[%c0_6, %c0_7] : memref<64x128xf32, #tpu.memory_space<vmem>>, vector<64x128xf32>
    %cst_8 = arith.constant dense<0.000000e+00> : vector<8x128xf32>
    %9 = tpu.matmul %7, %8, %cst_8 {dimension_numbers = #tpu.dot_dimension_numbers<[1], [0], [0], [1], [0, 0, 1, 1], [], []>} : vector<8x64xf32>, vector<64x128xf32>, vector<8x128xf32> -> vector<8x128xf32>
    %c0_9 = arith.constant 0 : index
    %c0_10 = arith.constant 0 : index
    %10 = vector.load %arg4[%c0_9, %c0_10] : memref<1x128xf32, #tpu.memory_space<vmem>>, vector<1x128xf32>
    %11 = vector.broadcast %10 : vector<1x128xf32> to vector<8x128xf32>
    %12 = arith.addf %9, %11 : vector<8x128xf32>
    %13 = tpu.iota {dimensions = array<i32: 1>} : vector<8x128xi32>
    %c1_i32 = arith.constant 1 : i32
    %14 = vector.broadcast %c1_i32 : i32 to vector<8x128xi32>
    %15 = arith.cmpi sge, %13, %14 : vector<8x128xi32>
    %c5_i32 = arith.constant 5 : i32
    %16 = vector.broadcast %c5_i32 : i32 to vector<8x128xi32>
    %17 = arith.cmpi slt, %13, %16 : vector<8x128xi32>
    %18 = arith.andi %15, %17 : vector<8x128xi1>
    %19 = math.tanh %12 : vector<8x128xf32>
    %20 = arith.select %18, %19, %12 : vector<8x128xi1>, vector<8x128xf32>
    %c0_11 = arith.constant 0 : index
    %c0_12 = arith.constant 0 : index
    %21 = vector.load %arg5[%c0_11, %c0_12] : memref<8x128xf32, #tpu.memory_space<vmem>>, vector<8x128xf32>
    tpu.vector_store %arg5[%c0_11, %c0_12], %20 {strides = array<i32>} : memref<8x128xf32, #tpu.memory_space<vmem>>, vector<8x128xf32>,
    return
  }
}

</mosaic_0001>

<llo_original>
// kernel: tpu_custom_call.1
$region0: #{tpu_custom_call.1}
  #allocation0 [shape = 'u32[]', space=smem, size = 0x4, offset = 0x4, fixed_abs, tag = 'smem constant byte address 0x4 - core index']
  #allocation1 [shape = 'u32[144,128]{1,0:T(1,128)}', space=vmem, size = 0x12000, scoped, tag = 'internal scratch']
  %s0 = inlined_call_operand.hbm [shape: f32[8,32], index: 0, kind: input, shape index: {}]
  %s1 = inlined_call_operand.hbm [shape: f32[32,64], index: 1, kind: input, shape index: {}]
  %s2 = inlined_call_operand.vmem [shape: f32[1,64], index: 2, kind: input, shape index: {}]
  %s3 = inlined_call_operand.hbm [shape: f32[64,128], index: 3, kind: input, shape index: {}]
  %s4 = inlined_call_operand.vmem [shape: f32[1,128], index: 4, kind: input, shape index: {}]
  %s5 = inlined_call_operand.hbm [shape: f32[8,128], index: 5, kind: output, shape index: {}]
  %s6 = sld [smem:[#allocation0]]
  $region42: #{tpu_custom_call.1} parent=0
    _
  %s8 = ssub.s32 1, %s6
  %s9 = scalar_select 0, %s8, %s6
  $region1: #{tpu_custom_call.1} parent=0
    #allocation2 [shape = 'u8[4096]{0}', space=vmem, size = 0x1000, scoped, tag = 'input window, operand 0, single buffered']
    #allocation3 [shape = 's32[1]{0}', space=sflag, size = 0x4, scoped, tag = 'scoped memory for tpu_custom_call.1']
    #allocation4 [shape = 's32[1]{0}', space=sflag, size = 0x4, scoped, tag = 'scoped memory for tpu_custom_call.1']
    #allocation5 [shape = 'u8[16384]{0}', space=vmem, size = 0x4000, scoped, tag = 'input window, operand 1, single buffered']
    #allocation6 [shape = 's32[1]{0}', space=sflag, size = 0x4, scoped, tag = 'scoped memory for tpu_custom_call.1']
    #allocation7 [shape = 'u8[32768]{0}', space=vmem, size = 0x8000, scoped, tag = 'input window, operand 3, single buffered']
    #allocation8 [shape = 'u8[4096]{0}', space=vmem, size = 0x1000, scoped, tag = 'output window, operand 0, single buffered']
    %10 = vsyncpa [#allocation3], 0
    %11 = vsyncpa [#allocation6], 0
    %12 = vsyncpa [#allocation4], 0
    // Predicated region
    $region2: #{tpu_custom_call.1} parent=1 // pred_check
      _
    $region3: #{tpu_custom_call.1} parent=1 // pred_check_branch
      %14 = sbr.rel (0) target = $region5
    $region4: #{tpu_custom_call.1} parent=1 // pred_region
      %s16 = ssub.s32 128, 128
      %17 = vsyncadd [#allocation3], %s16
      %s19 = sshll.u32 [#allocation2], 4
      %s20 = int_to_ptr.vmem [resolvable:$true] %s19
      %22 = dma.hbm_to_vmem [thread:$0]  %s0, 128, %s20, [#allocation3]
    $region5: #{tpu_custom_call.1} parent=1 // pred_fallthru
      _
    // Predicated region
    $region6: #{tpu_custom_call.1} parent=1 // pred_check
      _
    $region7: #{tpu_custom_call.1} parent=1 // pred_check_branch
      %24 = sbr.rel (0) target = $region9
    $region8: #{tpu_custom_call.1} parent=1 // pred_region
      %s26 = ssub.s32 512, 512
      %27 = vsyncadd [#allocation6], %s26
      %s28 = sshll.u32 [#allocation5], 4
      %s29 = int_to_ptr.vmem [resolvable:$true] %s28
      %34 = dma.hbm_to_vmem [thread:$0]  %s1, 512, %s29, [#allocation6], 128, 128, 8
    $region9: #{tpu_custom_call.1} parent=1 // pred_fallthru
      _
    // Predicated region
    $region10: #{tpu_custom_call.1} parent=1 // pred_check
      _
    $region11: #{tpu_custom_call.1} parent=1 // pred_check_branch
      %36 = sbr.rel (0) target = $region13
    $region12: #{tpu_custom_call.1} parent=1 // pred_region
      _
    $region13: #{tpu_custom_call.1} parent=1 // pred_fallthru
      _
    // Predicated region
    $region14: #{tpu_custom_call.1} parent=1 // pred_check
      _
    $region15: #{tpu_custom_call.1} parent=1 // pred_check_branch
      %38 = sbr.rel (0) target = $region17
    $region16: #{tpu_custom_call.1} parent=1 // pred_region
      %s40 = ssub.s32 1024, 1024
      %41 = vsyncadd [#allocation6], %s40
      %s42 = sshll.u32 [#allocation7], 4
      %s43 = int_to_ptr.vmem [resolvable:$true] %s42
      %48 = dma.hbm_to_vmem [thread:$0]  %s3, 1024, %s43, [#allocation6], 128, 128, 8
    $region17: #{tpu_custom_call.1} parent=1 // pred_fallthru
      _
    // Predicated region
    $region18: #{tpu_custom_call.1} parent=1 // pred_check
      _
    $region19: #{tpu_custom_call.1} parent=1 // pred_check_branch
      %50 = sbr.rel (0) target = $region21
    $region20: #{tpu_custom_call.1} parent=1 // pred_region
      _
    $region21: #{tpu_custom_call.1} parent=1 // pred_fallthru
      _
    // Predicated region
    $region22: #{tpu_custom_call.1} parent=1 // pred_check
      _
    $region23: #{tpu_custom_call.1} parent=1 // pred_check_branch
      %52 = sbr.rel (0) target = $region25
    $region24: #{tpu_custom_call.1} parent=1 // pred_region
      %53 = dma.done [#allocation3], 128
    $region25: #{tpu_custom_call.1} parent=1 // pred_fallthru
      _
    // Predicated region
    $region26: #{tpu_custom_call.1} parent=1 // pred_check
      _
    $region27: #{tpu_custom_call.1} parent=1 // pred_check_branch
      %55 = sbr.rel (0) target = $region29
    $region28: #{tpu_custom_call.1} parent=1 // pred_region
      %56 = dma.done [#allocation6], 512
    $region29: #{tpu_custom_call.1} parent=1 // pred_fallthru
      _
    // Predicated region
    $region30: #{tpu_custom_call.1} parent=1 // pred_check
      _
    $region31: #{tpu_custom_call.1} parent=1 // pred_check_branch
      %58 = sbr.rel (0) target = $region33
    $region32: #{tpu_custom_call.1} parent=1 // pred_region
      %59 = dma.done [#allocation6], 1024
    $region33: #{tpu_custom_call.1} parent=1 // pred_fallthru
      _
    %v60 = vld [vmem:[#allocation2] sm:$0xff]
    %v61 = vld [vmem:[#allocation5] sm:$0xff]
    %v62 = vld [vmem:[#allocation5 + $0x8] sm:$0xff]
    %v63 = vld [vmem:[#allocation5 + $0x10] sm:$0xff]
    %v64 = vld [vmem:[#allocation5 + $0x18] sm:$0xff]
    %v65 = vld [vmem:[%s2] sm:$0x1]
    %v67 = vlaneseq
    %v68 = vshrl.u32 %v67, 7
    %v69 = vsub.s32 0, %v68
    %v70 = vrot.slane %v65, %v69
    %vm72 = vcmask 261120
    %v74 = vsel %vm72, %v60, 0
    %76 = vmatprep.subr.mxu0 0.0
    %77 = vmatpush1.msra.mxu0 0.0
    %78 = vmatprep.subr.mxu0 0.0
    %79 = vmatpush1.msra.mxu0 0.0
    %80 = vmatprep.subr.mxu0 0.0
    %81 = vmatpush1.msra.mxu0 0.0
    %82 = vmatprep.subr.mxu0 0.0
    %83 = vmatpush1.msra.mxu0 0.0
    %84 = vmatprep.subr.mxu0 0.0
    %85 = vmatpush1.msra.mxu0 0.0
    %86 = vmatprep.subr.mxu0 0.0
    %87 = vmatpush1.msra.mxu0 0.0
    %88 = vmatprep.subr.mxu0 0.0
    %89 = vmatpush1.msra.mxu0 0.0
    %90 = vmatprep.subr.mxu0 0.0
    %91 = vmatpush1.msra.mxu0 0.0
    %92 = vmatprep.subr.mxu0 0.0
    %93 = vmatpush1.msra.mxu0 0.0
    %94 = vmatprep.subr.mxu0 0.0
    %95 = vmatpush1.msra.mxu0 0.0
    %96 = vmatprep.subr.mxu0 0.0
    %97 = vmatpush1.msra.mxu0 0.0
    %98 = vmatprep.subr.mxu0 0.0
    %99 = vmatpush1.msra.mxu0 0.0
    %100 = vmatprep.subr.mxu0 0.0
    %101 = vmatpush1.msra.mxu0 %v64
    %102 = vmatprep.subr.mxu0 0.0
    %103 = vmatpush1.msra.mxu0 %v63
    %104 = vmatprep.subr.mxu0 0.0
    %105 = vmatpush1.msra.mxu0 %v62
    %106 = vmatprep.subr.mxu0 0.0
    %107 = vmatpush1.msra.mxu0 %v61
    %108 = vmatprep.subr.mxu0 0.0
    %109 = vmatpush2.msra.mxu0 0.0
    %110 = vmatprep.subr.mxu0 0.0
    %111 = vmatpush2.msra.mxu0 0.0
    %112 = vmatprep.subr.mxu0 0.0
    %113 = vmatpush2.msra.mxu0 0.0
    %114 = vmatprep.subr.mxu0 0.0
    %115 = vmatpush2.msra.mxu0 0.0
    %116 = vmatprep.subr.mxu0 0.0
    %117 = vmatpush2.msra.mxu0 0.0
    %118 = vmatprep.subr.mxu0 0.0
    %119 = vmatpush2.msra.mxu0 0.0
    %120 = vmatprep.subr.mxu0 0.0
    %121 = vmatpush2.msra.mxu0 0.0
    %122 = vmatprep.subr.mxu0 0.0
    %123 = vmatpush2.msra.mxu0 0.0
    %124 = vmatprep.subr.mxu0 0.0
    %125 = vmatpush2.msra.mxu0 0.0
    %126 = vmatprep.subr.mxu0 0.0
    %127 = vmatpush2.msra.mxu0 0.0
    %128 = vmatprep.subr.mxu0 0.0
    %129 = vmatpush2.msra.mxu0 0.0
    %130 = vmatprep.subr.mxu0 0.0
    %131 = vmatpush2.msra.mxu0 0.0
    %132 = vmatprep.subr.mxu0 0.0
    %133 = vmatpush2.msra.mxu0 0.0
    %134 = vmatprep.subr.mxu0 0.0
    %135 = vmatpush2.msra.mxu0 0.0
    %136 = vmatprep.subr.mxu0 0.0
    %137 = vmatpush2.msra.mxu0 0.0
    %138 = vmatprep.subr.mxu0 0.0
    %139 = vmatpush2.msra.mxu0 0.0
    %140 = vmatprep.mubr.f32.mxu0 0.0
    %141 = vmatmul.mubr.f32.gmra.mxu0 %v74
    %v142 = vpop.f32.mrf.mxu0
    %v143 = vadd.f32 %v70, %v142
    %v144 = vpop.f32.mrf.mxu0
    %145 = vdwg.mxu0
    %v146 = vmax.f32 %v143, 0.0
    %v147 = vld [vmem:[#allocation7] sm:$0xff]
    %v148 = vld [vmem:[#allocation7 + $0x8] sm:$0xff]
    %v149 = vld [vmem:[#allocation7 + $0x10] sm:$0xff]
    %v150 = vld [vmem:[#allocation7 + $0x18] sm:$0xff]
    %v151 = vld [vmem:[#allocation7 + $0x20] sm:$0xff]
    %v152 = vld [vmem:[#allocation7 + $0x28] sm:$0xff]
    %v153 = vld [vmem:[#allocation7 + $0x30] sm:$0xff]
    %v154 = vld [vmem:[#allocation7 + $0x38] sm:$0xff]
    %v155 = vld [vmem:[%s4] sm:$0x1]
    %v157 = vlaneseq
    %v158 = vshrl.u32 %v157, 7
    %v159 = vsub.s32 0, %v158
    %v160 = vrot.slane %v155, %v159
    %vm162 = vcmask 523264
    %v164 = vsel %vm162, %v146, 0
    %166 = vmatprep.subr.mxu0 0.0
    %167 = vmatpush1.msra.mxu0 0.0
    %168 = vmatprep.subr.mxu0 0.0
    %169 = vmatpush1.msra.mxu0 0.0
    %170 = vmatprep.subr.mxu0 0.0
    %171 = vmatpush1.msra.mxu0 0.0
    %172 = vmatprep.subr.mxu0 0.0
    %173 = vmatpush1.msra.mxu0 0.0
    %174 = vmatprep.subr.mxu0 0.0
    %175 = vmatpush1.msra.mxu0 0.0
    %176 = vmatprep.subr.mxu0 0.0
    %177 = vmatpush1.msra.mxu0 0.0
    %178 = vmatprep.subr.mxu0 0.0
    %179 = vmatpush1.msra.mxu0 0.0
    %180 = vmatprep.subr.mxu0 0.0
    %181 = vmatpush1.msra.mxu0 0.0
    %182 = vmatprep.subr.mxu0 0.0
    %183 = vmatpush1.msra.mxu0 %v154
    %184 = vmatprep.subr.mxu0 0.0
    %185 = vmatpush1.msra.mxu0 %v153
    %186 = vmatprep.subr.mxu0 0.0
    %187 = vmatpush1.msra.mxu0 %v152
    %188 = vmatprep.subr.mxu0 0.0
    %189 = vmatpush1.msra.mxu0 %v151
    %190 = vmatprep.subr.mxu0 0.0
    %191 = vmatpush1.msra.mxu0 %v150
    %192 = vmatprep.subr.mxu0 0.0
    %193 = vmatpush1.msra.mxu0 %v149
    %194 = vmatprep.subr.mxu0 0.0
    %195 = vmatpush1.msra.mxu0 %v148
    %196 = vmatprep.subr.mxu0 0.0
    %197 = vmatpush1.msra.mxu0 %v147
    %198 = vmatprep.subr.mxu0 0.0
    %199 = vmatpush2.msra.mxu0 0.0
    %200 = vmatprep.subr.mxu0 0.0
    %201 = vmatpush2.msra.mxu0 0.0
    %202 = vmatprep.subr.mxu0 0.0
    %203 = vmatpush2.msra.mxu0 0.0
    %204 = vmatprep.subr.mxu0 0.0
    %205 = vmatpush2.msra.mxu0 0.0
    %206 = vmatprep.subr.mxu0 0.0
    %207 = vmatpush2.msra.mxu0 0.0
    %208 = vmatprep.subr.mxu0 0.0
    %209 = vmatpush2.msra.mxu0 0.0
    %210 = vmatprep.subr.mxu0 0.0
    %211 = vmatpush2.msra.mxu0 0.0
    %212 = vmatprep.subr.mxu0 0.0
    %213 = vmatpush2.msra.mxu0 0.0
    %214 = vmatprep.subr.mxu0 0.0
    %215 = vmatpush2.msra.mxu0 0.0
    %216 = vmatprep.subr.mxu0 0.0
    %217 = vmatpush2.msra.mxu0 0.0
    %218 = vmatprep.subr.mxu0 0.0
    %219 = vmatpush2.msra.mxu0 0.0
    %220 = vmatprep.subr.mxu0 0.0
    %221 = vmatpush2.msra.mxu0 0.0
    %222 = vmatprep.subr.mxu0 0.0
    %223 = vmatpush2.msra.mxu0 0.0
    %224 = vmatprep.subr.mxu0 0.0
    %225 = vmatpush2.msra.mxu0 0.0
    %226 = vmatprep.subr.mxu0 0.0
    %227 = vmatpush2.msra.mxu0 0.0
    %228 = vmatprep.subr.mxu0 0.0
    %229 = vmatpush2.msra.mxu0 0.0
    %230 = vmatprep.mubr.f32.mxu0 0.0
    %231 = vmatmul.mubr.f32.gmra.mxu0 %v164
    %v232 = vpop.f32.mrf.mxu0
    %v233 = vadd.f32 %v160, %v232
    %v234 = vpop.f32.mrf.mxu0
    %235 = vdwg.mxu0
    %v236 = vlaneseq
    %v237 = vand.u32 %v236, 127
    %vm238 = vcmp.ge.s32.totalorder %v237, 1
    %vm239 = vcmp.lt.s32.totalorder %v237, 5
    %vm240 = vmand %vm238, %vm239
    %v241 = vtanh.pop %v233
    %v242 = vsel %vm240, %v241, %v233
    %243 = vst [vmem:[#allocation8] sm:$0xff] %v242
    // Predicated region
    $region34: #{tpu_custom_call.1} parent=1 // pred_check
      _
    $region35: #{tpu_custom_call.1} parent=1 // pred_check_branch
      %245 = sbr.rel (0) target = $region37
    $region36: #{tpu_custom_call.1} parent=1 // pred_region
      %s247 = ssub.s32 128, 128
      %248 = vsyncadd [#allocation4], %s247
      %s250 = sshll.u32 [#allocation8], 4
      %s251 = int_to_ptr.vmem [resolvable:$true] %s250
      %253 = dma.vmem_to_hbm [thread:$0]  %s251, 128, %s5, [#allocation4]
    $region37: #{tpu_custom_call.1} parent=1 // pred_fallthru
      _
    // Predicated region
    $region38: #{tpu_custom_call.1} parent=1 // pred_check
      _
    $region39: #{tpu_custom_call.1} parent=1 // pred_check_branch
      %255 = sbr.rel (0) target = $region41
    $region40: #{tpu_custom_call.1} parent=1 // pred_region
      %256 = dma.done [#allocation4], 128
    $region41: #{tpu_custom_call.1} parent=1 // pred_fallthru
      _
    %257 = vsyncpa [#allocation3], 1
    %258 = vsyncpa [#allocation6], 1
    %259 = vsyncpa [#allocation4], 1

</llo_original>
